<compile_context>
chip_gen: v7x
topology: tpu7x:2x2x1
jax: 0.10.0
libtpu: 0.0.40
codegen_flags: <defaults>
</compile_context>

<pallas_src>
import jax
import jax.numpy as jnp
from jax.experimental import pallas as pl
from jax.experimental.pallas import tpu as pltpu


TIME_EMB_DIM = 16
NODE_EMB_DIM = 32
OUT_DIM = 2
OUT_ROWS = 8  # output rows padded 2 -> 8 (one sublane group); writeback 32 B/row


def _round_up(x, m):
    return ((x + m - 1) // m) * m


def _root_mlp_kernel(tidx_ref, nidx_ref, t1t_ref, n1t_ref, w2t_ref, b2_ref, out_ref):
    """Fused (embedding lookup + Linear1) -> ReLU -> Linear2, batch on lanes.

    Shapes (TB = batch tile, lanes):
      tidx_ref/nidx_ref : (1, TB) int32
      t1t_ref           : (H, Vt_pad)  fused time table^T (b1 folded in)
      n1t_ref           : (H, Vn_pad)  fused node table^T
      w2t_ref           : (OUT_ROWS, H) padded W2^T
      b2_ref            : (OUT_ROWS, 1) f32
      out_ref           : (OUT_ROWS, TB) f32
    """
    tb = out_ref.shape[1]
    vt = t1t_ref.shape[1]
    vn = n1t_ref.shape[1]
    cdt = t1t_ref.dtype  # compute dtype for MXU operands (bf16 or f32)

    # Transposed one-hot selection: exact 0/1 values even in bf16.
    # onehot^T(idx) is simultaneously the embedding gather and Linear-1.
    t_oh = (
        jax.lax.broadcasted_iota(jnp.int32, (vt, tb), 0) == tidx_ref[...]
    ).astype(cdt)
    n_oh = (
        jax.lax.broadcasted_iota(jnp.int32, (vn, tb), 0) == nidx_ref[...]
    ).astype(cdt)

    # Layer 1 (bias b1 pre-folded into the time table): h_T = (H, TB), f32 acc.
    h = jnp.dot(t1t_ref[...], t_oh, preferred_element_type=jnp.float32)
    h = h + jnp.dot(n1t_ref[...], n_oh, preferred_element_type=jnp.float32)
    h = jnp.maximum(h, 0.0).astype(cdt)  # ReLU (VPU) + cast for layer-2 MXU

    # Layer 2: (OUT_ROWS, H) @ (H, TB) -> lane-dense (OUT_ROWS, TB) store.
    out_ref[...] = (
        jnp.dot(w2t_ref[...], h, preferred_element_type=jnp.float32) + b2_ref[...]
    ).astype(out_ref.dtype)


def fuse_params(params, *, use_bf16=True):
    """One-time parameter prep (hoisted out of the forward pass).

    Folds the embedding tables and b1 into Linear-1, transposes everything to
    the batch-on-lanes layout, pads vocab dims to multiples of 128, pads the
    output rows to OUT_ROWS, and optionally casts MXU operands to bf16.
    """
    w1 = params["w1"]  # (48, H), stored as (in, out) = PyTorch weight^T
    hidden = w1.shape[1]

    # Fused tables, transposed to (H, V); fold b1 into the time table columns.
    # NOTE: valid (in-range) time indices always select exactly one column, so
    # b1 is applied exactly once; out-of-range indices (which the reference
    # embedding would reject anyway) would lose b1.
    t1t = (params["time_embedding"] @ w1[:TIME_EMB_DIM, :]).T  # (H, Vt)
    t1t = t1t + params["b1"][:, None]
    n1t = (params["node_embedding"] @ w1[TIME_EMB_DIM:, :]).T  # (H, Vn)

    vt_pad = _round_up(t1t.shape[1], 128)
    vn_pad = _round_up(n1t.shape[1], 128)
    t1t = jnp.pad(t1t, ((0, 0), (0, vt_pad - t1t.shape[1])))
    n1t = jnp.pad(n1t, ((0, 0), (0, vn_pad - n1t.shape[1])))

    w2t = jnp.pad(params["w2"].T, ((0, OUT_ROWS - OUT_DIM), (0, 0)))  # (8, H)
    b2 = jnp.pad(params["b2"], (0, OUT_ROWS - OUT_DIM)).reshape(OUT_ROWS, 1)

    cdt = jnp.bfloat16 if use_bf16 else jnp.float32
    return {
        "t1t": t1t.astype(cdt),
        "n1t": n1t.astype(cdt),
        "w2t": w2t.astype(cdt),
        "b2": b2.astype(jnp.float32),
        "hidden": hidden,
    }


def root_mlp_forward(time_bucket_idx, node_idx, fused, *, max_tile_rows=2048):
    """Forward pass equivalent to RootMLP.forward.

    Args:
      time_bucket_idx: (B,) int32
      node_idx:        (B,) int32
      fused: output of fuse_params(params)

    Returns:
      (B, 2) float32 moments.
    """
    t1t, n1t, w2t, b2 = fused["t1t"], fused["n1t"], fused["w2t"], fused["b2"]
    hidden = fused["hidden"]
    vt_pad, vn_pad = t1t.shape[1], n1t.shape[1]

    # --- batch tiling: TB is a multiple of 128 (lane axis) ------------------
    b = time_bucket_idx.shape[0]
    nrows = _round_up(b, 128)
    tb = min(_round_up(max_tile_rows, 128), nrows)
    # Keep at least 2 grid tiles when the batch permits so ("parallel",) can
    # feed both v7x TensorCores (no-op on single-TC v5e/v6e).
    if nrows >= 256 and nrows // tb < 2:
        tb = _round_up(pl.cdiv(nrows, 2), 128)
    b_pad = _round_up(b, tb)
    grid = (b_pad // tb,)

    # Lane-dense index rows: (1, b_pad), tiled as (1, TB) blocks.
    tidx = jnp.pad(time_bucket_idx.astype(jnp.int32), (0, b_pad - b)).reshape(1, b_pad)
    nidx = jnp.pad(node_idx.astype(jnp.int32), (0, b_pad - b)).reshape(1, b_pad)

    itemsize = jnp.dtype(t1t.dtype).itemsize
    cost = pl.CostEstimate(
        flops=b_pad * (2 * (vt_pad + vn_pad) * hidden + 2 * hidden * OUT_ROWS + hidden),
        transcendentals=0,
        bytes_accessed=b_pad * (2 * 4 + OUT_ROWS * 4)
        + itemsize * (t1t.size + n1t.size + w2t.size)
        + 4 * b2.size,
    )

    out = pl.pallas_call(
        _root_mlp_kernel,
        out_shape=jax.ShapeDtypeStruct((OUT_ROWS, b_pad), jnp.float32),
        grid_spec=pltpu.PrefetchScalarGridSpec(
            num_scalar_prefetch=0,
            grid=grid,
            in_specs=[
                pl.BlockSpec((1, tb), lambda i: (0, i)),          # time indices (lane-dense)
                pl.BlockSpec((1, tb), lambda i: (0, i)),          # node indices (lane-dense)
                pl.BlockSpec(t1t.shape, lambda i: (0, 0)),        # fused time table^T (resident)
                pl.BlockSpec(n1t.shape, lambda i: (0, 0)),        # fused node table^T (resident)
                pl.BlockSpec(w2t.shape, lambda i: (0, 0)),        # padded W2^T (resident)
                pl.BlockSpec(b2.shape, lambda i: (0, 0)),         # padded b2 (resident)
            ],
            out_specs=pl.BlockSpec((OUT_ROWS, tb), lambda i: (0, i)),
        ),
        compiler_params=pltpu.CompilerParams(
            dimension_semantics=("parallel",),
        ),
        cost_estimate=cost,
    )(tidx, nidx, t1t, n1t, w2t, b2)

    # Transpose back to (B, 2) in the wrapper (tiny XLA op outside the kernel).
    return out[:OUT_DIM, :b].T


def init_params(key, vocab_size, time_bucket_vocab_size, hidden_dim=128):
    """Deterministic synthetic parameter init matching RootMLP.__init__ shapes."""
    k0, k1, k2, k3, k4, k5 = jax.random.split(key, 6)
    input_dim = TIME_EMB_DIM + NODE_EMB_DIM  # 48
    return {
        "node_embedding": jax.random.normal(k0, (vocab_size, NODE_EMB_DIM), jnp.float32),
        "time_embedding": jax.random.normal(k1, (time_bucket_vocab_size, TIME_EMB_DIM), jnp.float32),
        # Stored as (in, out): equivalent to PyTorch Linear weight transposed.
        "w1": jax.random.normal(k2, (input_dim, hidden_dim), jnp.float32) * 0.1,
        "b1": jax.random.normal(k3, (hidden_dim,), jnp.float32) * 0.01,
        "w2": jax.random.normal(k4, (hidden_dim, OUT_DIM), jnp.float32) * 0.1,
        "b2": jax.random.normal(k5, (OUT_DIM,), jnp.float32) * 0.01,
    }


def _reference_forward(time_bucket_idx, node_idx, params):
    """Pure-JAX reference mirroring the PyTorch module, for correctness check."""
    time_emb = jnp.take(params["time_embedding"], time_bucket_idx, axis=0)
    node_emb = jnp.take(params["node_embedding"], node_idx, axis=0)
    x = jnp.concatenate([time_emb, node_emb], axis=1)  # (B, 48)
    h = jnp.maximum(x @ params["w1"] + params["b1"], 0.0)
    return h @ params["w2"] + params["b2"]


if __name__ == "__main__":
    vocab_size = 64
    time_bucket_vocab_size = 24
    hidden_dim = 128
    batch = 8

    key = jax.random.PRNGKey(0)
    kp, kt, kn = jax.random.split(key, 3)

    params = init_params(kp, vocab_size, time_bucket_vocab_size, hidden_dim)
    time_bucket_idx = jax.random.randint(kt, (batch,), 0, time_bucket_vocab_size, jnp.int32)
    node_idx = jax.random.randint(kn, (batch,), 0, vocab_size, jnp.int32)

    ref = _reference_forward(time_bucket_idx, node_idx, params)

    # f32 validation path: tight tolerance against the reference.
    fused_f32 = fuse_params(params, use_bf16=False)
    out_f32 = root_mlp_forward(time_bucket_idx, node_idx, fused_f32)
    jax.block_until_ready(out_f32)
    assert out_f32.shape == (batch, OUT_DIM), out_f32.shape
    assert jnp.allclose(out_f32, ref, atol=1e-4, rtol=1e-4), "f32 mismatch vs reference"

    # bf16 MXU path (default for performance): relaxed tolerance (table/operand
    # rounding introduces ~1e-3 absolute error on these magnitudes).
    fused_bf16 = fuse_params(params, use_bf16=True)
    out_bf16 = root_mlp_forward(time_bucket_idx, node_idx, fused_bf16)
    jax.block_until_ready(out_bf16)
    assert out_bf16.shape == (batch, OUT_DIM), out_bf16.shape
    assert jnp.allclose(out_bf16, ref, atol=5e-2, rtol=5e-2), "bf16 mismatch vs reference"

    print("KERNEL_OK")
</pallas_src>

<mosaic_0001>
module attributes {stable_mosaic.version = 11 : i64} {
  func.func @_root_mlp_kernel(%arg0: i32, %arg1: memref<1x128xi32, #tpu.memory_space<vmem>>, %arg2: memref<1x128xi32, #tpu.memory_space<vmem>>, %arg3: memref<128x128xf32, #tpu.memory_space<vmem>>, %arg4: memref<128x128xf32, #tpu.memory_space<vmem>>, %arg5: memref<8x128xf32, #tpu.memory_space<vmem>>, %arg6: memref<8x1xf32, #tpu.memory_space<vmem>>, %arg7: memref<8x128xf32, #tpu.memory_space<vmem>>) attributes {dimension_semantics = [#tpu.dimension_semantics<parallel>], iteration_bounds = array<i64: 1>, scalar_prefetch = 0 : i64, scratch_operands = 0 : i64, tpu.core_type = #tpu.core_type<tc>, window_params = [{transform_indices = @transform_0, window_bounds = array<i64: 1, 128>}, {transform_indices = @transform_1, window_bounds = array<i64: 1, 128>}, {pipeline_mode = #tpu.pipeline_mode<synchronous>, transform_indices = @transform_2, window_bounds = array<i64: 128, 128>}, {pipeline_mode = #tpu.pipeline_mode<synchronous>, transform_indices = @transform_3, window_bounds = array<i64: 128, 128>}, {pipeline_mode = #tpu.pipeline_mode<synchronous>, transform_indices = @transform_4, window_bounds = array<i64: 8, 128>}, {pipeline_mode = #tpu.pipeline_mode<synchronous>, transform_indices = @transform_5, window_bounds = array<i64: 8, 1>}, {transform_indices = @transform_6, window_bounds = array<i64: 8, 128>}]} {
    %0 = tpu.iota {dimensions = array<i32: 0>} : vector<128x128xi32>
    %c0 = arith.constant 0 : index
    %c0_0 = arith.constant 0 : index
    %1 = vector.load %arg1[%c0, %c0_0] : memref<1x128xi32, #tpu.memory_space<vmem>>, vector<1x128xi32>
    %2 = vector.broadcast %1 : vector<1x128xi32> to vector<128x128xi32>
    %3 = arith.cmpi eq, %0, %2 : vector<128x128xi32>
    %4 = arith.extui %3 : vector<128x128xi1> to vector<128x128xi32>
    %5 = arith.sitofp %4 : vector<128x128xi32> to vector<128x128xf32>
    %6 = tpu.iota {dimensions = array<i32: 0>} : vector<128x128xi32>
    %c0_1 = arith.constant 0 : index
    %c0_2 = arith.constant 0 : index
    %7 = vector.load %arg2[%c0_1, %c0_2] : memref<1x128xi32, #tpu.memory_space<vmem>>, vector<1x128xi32>
    %8 = vector.broadcast %7 : vector<1x128xi32> to vector<128x128xi32>
    %9 = arith.cmpi eq, %6, %8 : vector<128x128xi32>
    %10 = arith.extui %9 : vector<128x128xi1> to vector<128x128xi32>
    %11 = arith.sitofp %10 : vector<128x128xi32> to vector<128x128xf32>
    %c0_3 = arith.constant 0 : index
    %c0_4 = arith.constant 0 : index
    %12 = vector.load %arg3[%c0_3, %c0_4] : memref<128x128xf32, #tpu.memory_space<vmem>>, vector<128x128xf32>
    %cst = arith.constant dense<0.000000e+00> : vector<128x128xf32>
    %13 = tpu.matmul %12, %5, %cst {dimension_numbers = #tpu.dot_dimension_numbers<[1], [0], [0], [1], [0, 0, 1, 1], [], []>} : vector<128x128xf32>, vector<128x128xf32>, vector<128x128xf32> -> vector<128x128xf32>
    %c0_5 = arith.constant 0 : index
    %c0_6 = arith.constant 0 : index
    %14 = vector.load %arg4[%c0_5, %c0_6] : memref<128x128xf32, #tpu.memory_space<vmem>>, vector<128x128xf32>
    %cst_7 = arith.constant dense<0.000000e+00> : vector<128x128xf32>
    %15 = tpu.matmul %14, %11, %cst_7 {dimension_numbers = #tpu.dot_dimension_numbers<[1], [0], [0], [1], [0, 0, 1, 1], [], []>} : vector<128x128xf32>, vector<128x128xf32>, vector<128x128xf32> -> vector<128x128xf32>
    %16 = arith.addf %13, %15 : vector<128x128xf32>
    %cst_8 = arith.constant 0.000000e+00 : f32
    %17 = vector.broadcast %cst_8 : f32 to vector<128x128xf32>
    %18 = arith.maximumf %16, %17 : vector<128x128xf32>
    %c0_9 = arith.constant 0 : index
    %c0_10 = arith.constant 0 : index
    %19 = vector.load %arg5[%c0_9, %c0_10] : memref<8x128xf32, #tpu.memory_space<vmem>>, vector<8x128xf32>
    %cst_11 = arith.constant dense<0.000000e+00> : vector<8x128xf32>
    %20 = tpu.matmul %19, %18, %cst_11 {dimension_numbers = #tpu.dot_dimension_numbers<[1], [0], [0], [1], [0, 0, 1, 1], [], []>} : vector<8x128xf32>, vector<128x128xf32>, vector<8x128xf32> -> vector<8x128xf32>
    %c0_12 = arith.constant 0 : index
    %c0_13 = arith.constant 0 : index
    %21 = vector.load %arg6[%c0_12, %c0_13] : memref<8x1xf32, #tpu.memory_space<vmem>>, vector<8x1xf32>
    %22 = vector.broadcast %21 : vector<8x1xf32> to vector<8x128xf32>
    %23 = arith.addf %20, %22 : vector<8x128xf32>
    %c0_14 = arith.constant 0 : index
    %c0_15 = arith.constant 0 : index
    %24 = vector.load %arg7[%c0_14, %c0_15] : memref<8x128xf32, #tpu.memory_space<vmem>>, vector<8x128xf32>
    tpu.vector_store %arg7[%c0_14, %c0_15], %23 {strides = array<i32>} : memref<8x128xf32, #tpu.memory_space<vmem>>, vector<8x128xf32>,
    return
  }
  func.func @transform_0(%arg0: i32) -> (i32, i32) {
    %c0_i32 = arith.constant 0 : i32
    %c0_i32_0 = arith.constant 0 : i32
    return %c0_i32, %arg0 : i32, i32
  }
  func.func @transform_1(%arg0: i32) -> (i32, i32) {
    %c0_i32 = arith.constant 0 : i32
    %c0_i32_0 = arith.constant 0 : i32
    return %c0_i32, %arg0 : i32, i32
  }
  func.func @transform_2(%arg0: i32) -> (i32, i32) {
    %c0_i32 = arith.constant 0 : i32
    %c0_i32_0 = arith.constant 0 : i32
    %c0_i32_1 = arith.constant 0 : i32
    return %c0_i32, %c0_i32_0 : i32, i32
  }
  func.func @transform_3(%arg0: i32) -> (i32, i32) {
    %c0_i32 = arith.constant 0 : i32
    %c0_i32_0 = arith.constant 0 : i32
    %c0_i32_1 = arith.constant 0 : i32
    return %c0_i32, %c0_i32_0 : i32, i32
  }
  func.func @transform_4(%arg0: i32) -> (i32, i32) {
    %c0_i32 = arith.constant 0 : i32
    %c0_i32_0 = arith.constant 0 : i32
    %c0_i32_1 = arith.constant 0 : i32
    return %c0_i32, %c0_i32_0 : i32, i32
  }
  func.func @transform_5(%arg0: i32) -> (i32, i32) {
    %c0_i32 = arith.constant 0 : i32
    %c0_i32_0 = arith.constant 0 : i32
    %c0_i32_1 = arith.constant 0 : i32
    return %c0_i32, %c0_i32_0 : i32, i32
  }
  func.func @transform_6(%arg0: i32) -> (i32, i32) {
    %c0_i32 = arith.constant 0 : i32
    %c0_i32_0 = arith.constant 0 : i32
    return %c0_i32, %arg0 : i32, i32
  }
}

</mosaic_0001>

<llo_original>
// kernel: tpu_custom_call.1
$region0: #{tpu_custom_call.1}
  #allocation0 [shape = 'u32[]', space=smem, size = 0x4, offset = 0x4, fixed_abs, tag = 'smem constant byte address 0x4 - core index']
  #allocation1 [shape = 'u32[144,128]{1,0:T(1,128)}', space=vmem, size = 0x12000, scoped, tag = 'internal scratch']
  %s0 = inlined_call_operand.vmem [shape: s32[1,128], index: 0, kind: input, shape index: {}]
  %s1 = inlined_call_operand.vmem [shape: s32[1,128], index: 1, kind: input, shape index: {}]
  %s2 = inlined_call_operand.hbm [shape: f32[128,128], index: 2, kind: input, shape index: {}]
  %s3 = inlined_call_operand.hbm [shape: f32[128,128], index: 3, kind: input, shape index: {}]
  %s4 = inlined_call_operand.vmem [shape: f32[8,128], index: 4, kind: input, shape index: {}]
  %s5 = inlined_call_operand.vmem [shape: f32[8,1], index: 5, kind: input, shape index: {}]
  %s6 = inlined_call_operand.hbm [shape: f32[8,128], index: 6, kind: output, shape index: {}]
  %s7 = sld [smem:[#allocation0]]
  $region42: #{tpu_custom_call.1} parent=0
    _
  %s9 = ssub.s32 1, %s7
  %s10 = scalar_select 0, %s9, %s7
  $region1: #{tpu_custom_call.1} parent=0
    #allocation2 [shape = 'u8[65536]{0}', space=vmem, size = 0x10000, scoped, tag = 'input window, operand 2, single buffered']
    #allocation3 [shape = 's32[1]{0}', space=sflag, size = 0x4, scoped, tag = 'scoped memory for tpu_custom_call.1']
    #allocation4 [shape = 's32[1]{0}', space=sflag, size = 0x4, scoped, tag = 'scoped memory for tpu_custom_call.1']
    #allocation5 [shape = 'u8[65536]{0}', space=vmem, size = 0x10000, scoped, tag = 'input window, operand 3, single buffered']
    #allocation6 [shape = 's32[1]{0}', space=sflag, size = 0x4, scoped, tag = 'scoped memory for tpu_custom_call.1']
    #allocation7 [shape = 'u8[4096]{0}', space=vmem, size = 0x1000, scoped, tag = 'output window, operand 0, single buffered']
    %11 = vsyncpa [#allocation3], 0
    %12 = vsyncpa [#allocation6], 0
    %13 = vsyncpa [#allocation4], 0
    // Predicated region
    $region2: #{tpu_custom_call.1} parent=1 // pred_check
      _
    $region3: #{tpu_custom_call.1} parent=1 // pred_check_branch
      %15 = sbr.rel (0) target = $region5
    $region4: #{tpu_custom_call.1} parent=1 // pred_region
      _
    $region5: #{tpu_custom_call.1} parent=1 // pred_fallthru
      _
    // Predicated region
    $region6: #{tpu_custom_call.1} parent=1 // pred_check
      _
    $region7: #{tpu_custom_call.1} parent=1 // pred_check_branch
      %17 = sbr.rel (0) target = $region9
    $region8: #{tpu_custom_call.1} parent=1 // pred_region
      _
    $region9: #{tpu_custom_call.1} parent=1 // pred_fallthru
      _
    // Predicated region
    $region10: #{tpu_custom_call.1} parent=1 // pred_check
      _
    $region11: #{tpu_custom_call.1} parent=1 // pred_check_branch
      %19 = sbr.rel (0) target = $region13
    $region12: #{tpu_custom_call.1} parent=1 // pred_region
      %s21 = ssub.s32 2048, 2048
      %22 = vsyncadd [#allocation3], %s21
      %s23 = sshll.u32 [#allocation2], 4
      %s24 = int_to_ptr.vmem [resolvable:$true] %s23
      %29 = dma.hbm_to_vmem [thread:$0]  %s2, 2048, %s24, [#allocation3], 128, 128, 8
    $region13: #{tpu_custom_call.1} parent=1 // pred_fallthru
      _
    // Predicated region
    $region14: #{tpu_custom_call.1} parent=1 // pred_check
      _
    $region15: #{tpu_custom_call.1} parent=1 // pred_check_branch
      %31 = sbr.rel (0) target = $region17
    $region16: #{tpu_custom_call.1} parent=1 // pred_region
      %s33 = ssub.s32 2048, 2048
      %34 = vsyncadd [#allocation6], %s33
      %s35 = sshll.u32 [#allocation5], 4
      %s36 = int_to_ptr.vmem [resolvable:$true] %s35
      %41 = dma.hbm_to_vmem [thread:$0]  %s3, 2048, %s36, [#allocation6], 128, 128, 8
    $region17: #{tpu_custom_call.1} parent=1 // pred_fallthru
      _
    // Predicated region
    $region18: #{tpu_custom_call.1} parent=1 // pred_check
      _
    $region19: #{tpu_custom_call.1} parent=1 // pred_check_branch
      %43 = sbr.rel (0) target = $region21
    $region20: #{tpu_custom_call.1} parent=1 // pred_region
      _
    $region21: #{tpu_custom_call.1} parent=1 // pred_fallthru
      _
    // Predicated region
    $region22: #{tpu_custom_call.1} parent=1 // pred_check
      _
    $region23: #{tpu_custom_call.1} parent=1 // pred_check_branch
      %45 = sbr.rel (0) target = $region25
    $region24: #{tpu_custom_call.1} parent=1 // pred_region
      _
    $region25: #{tpu_custom_call.1} parent=1 // pred_fallthru
      _
    // Predicated region
    $region26: #{tpu_custom_call.1} parent=1 // pred_check
      _
    $region27: #{tpu_custom_call.1} parent=1 // pred_check_branch
      %47 = sbr.rel (0) target = $region29
    $region28: #{tpu_custom_call.1} parent=1 // pred_region
      %48 = dma.done [#allocation3], 2048
    $region29: #{tpu_custom_call.1} parent=1 // pred_fallthru
      _
    // Predicated region
    $region30: #{tpu_custom_call.1} parent=1 // pred_check
      _
    $region31: #{tpu_custom_call.1} parent=1 // pred_check_branch
      %50 = sbr.rel (0) target = $region33
    $region32: #{tpu_custom_call.1} parent=1 // pred_region
      %51 = dma.done [#allocation6], 2048
    $region33: #{tpu_custom_call.1} parent=1 // pred_fallthru
      _
    %v52 = vlaneseq
    %v53 = vshrl.u32 %v52, 7
    %v54 = vadd.s32 %v53, 8
    %v55 = vadd.s32 %v53, 16
    %v56 = vadd.s32 %v53, 24
    %v57 = vadd.s32 %v53, 32
    %v58 = vadd.s32 %v53, 40
    %v59 = vadd.s32 %v53, 48
    %v60 = vadd.s32 %v53, 56
    %v61 = vadd.s32 %v53, 64
    %v62 = vadd.s32 %v53, 72
    %v63 = vadd.s32 %v53, 80
    %v64 = vadd.s32 %v53, 88
    %v65 = vadd.s32 %v53, 96
    %v66 = vadd.s32 %v53, 104
    %v67 = vadd.s32 %v53, 112
    %v68 = vadd.s32 %v53, 120
    %v69 = vld [vmem:[%s0] sm:$0x1]
    %v70 = vlaneseq
    %v71 = vshrl.u32 %v70, 7
    %v72 = vsub.s32 0, %v71
    %v73 = vrot.slane %v69, %v72
    %vm74 = vcmp.eq.s32.totalorder %v53, %v73
    %vm75 = vcmp.eq.s32.totalorder %v54, %v73
    %vm76 = vcmp.eq.s32.totalorder %v55, %v73
    %vm77 = vcmp.eq.s32.totalorder %v56, %v73
    %vm78 = vcmp.eq.s32.totalorder %v57, %v73
    %vm79 = vcmp.eq.s32.totalorder %v58, %v73
    %vm80 = vcmp.eq.s32.totalorder %v59, %v73
    %vm81 = vcmp.eq.s32.totalorder %v60, %v73
    %vm82 = vcmp.eq.s32.totalorder %v61, %v73
    %vm83 = vcmp.eq.s32.totalorder %v62, %v73
    %vm84 = vcmp.eq.s32.totalorder %v63, %v73
    %vm85 = vcmp.eq.s32.totalorder %v64, %v73
    %vm86 = vcmp.eq.s32.totalorder %v65, %v73
    %vm87 = vcmp.eq.s32.totalorder %v66, %v73
    %vm88 = vcmp.eq.s32.totalorder %v67, %v73
    %vm89 = vcmp.eq.s32.totalorder %v68, %v73
    %v90 = vsel %vm74, 1, 0
    %v91 = vsel %vm75, 1, 0
    %v92 = vsel %vm76, 1, 0
    %v93 = vsel %vm77, 1, 0
    %v94 = vsel %vm78, 1, 0
    %v95 = vsel %vm79, 1, 0
    %v96 = vsel %vm80, 1, 0
    %v97 = vsel %vm81, 1, 0
    %v98 = vsel %vm82, 1, 0
    %v99 = vsel %vm83, 1, 0
    %v100 = vsel %vm84, 1, 0
    %v101 = vsel %vm85, 1, 0
    %v102 = vsel %vm86, 1, 0
    %v103 = vsel %vm87, 1, 0
    %v104 = vsel %vm88, 1, 0
    %v105 = vsel %vm89, 1, 0
    %v106 = vcvt.s32.f32 %v90
    %v107 = vcvt.s32.f32 %v91
    %v108 = vcvt.s32.f32 %v92
    %v109 = vcvt.s32.f32 %v93
    %v110 = vcvt.s32.f32 %v94
    %v111 = vcvt.s32.f32 %v95
    %v112 = vcvt.s32.f32 %v96
    %v113 = vcvt.s32.f32 %v97
    %v114 = vcvt.s32.f32 %v98
    %v115 = vcvt.s32.f32 %v99
    %v116 = vcvt.s32.f32 %v100
    %v117 = vcvt.s32.f32 %v101
    %v118 = vcvt.s32.f32 %v102
    %v119 = vcvt.s32.f32 %v103
    %v120 = vcvt.s32.f32 %v104
    %v121 = vcvt.s32.f32 %v105
    %v122 = vld [vmem:[%s1] sm:$0x1]
    %v123 = vlaneseq
    %v124 = vshrl.u32 %v123, 7
    %v125 = vsub.s32 0, %v124
    %v126 = vrot.slane %v122, %v125
    %vm127 = vcmp.eq.s32.totalorder %v53, %v126
    %vm128 = vcmp.eq.s32.totalorder %v54, %v126
    %vm129 = vcmp.eq.s32.totalorder %v55, %v126
    %vm130 = vcmp.eq.s32.totalorder %v56, %v126
    %vm131 = vcmp.eq.s32.totalorder %v57, %v126
    %vm132 = vcmp.eq.s32.totalorder %v58, %v126
    %vm133 = vcmp.eq.s32.totalorder %v59, %v126
    %vm134 = vcmp.eq.s32.totalorder %v60, %v126
    %vm135 = vcmp.eq.s32.totalorder %v61, %v126
    %vm136 = vcmp.eq.s32.totalorder %v62, %v126
    %vm137 = vcmp.eq.s32.totalorder %v63, %v126
    %vm138 = vcmp.eq.s32.totalorder %v64, %v126
    %vm139 = vcmp.eq.s32.totalorder %v65, %v126
    %vm140 = vcmp.eq.s32.totalorder %v66, %v126
    %vm141 = vcmp.eq.s32.totalorder %v67, %v126
    %vm142 = vcmp.eq.s32.totalorder %v68, %v126
    %v143 = vsel %vm127, 1, 0
    %v144 = vsel %vm128, 1, 0
    %v145 = vsel %vm129, 1, 0
    %v146 = vsel %vm130, 1, 0
    %v147 = vsel %vm131, 1, 0
    %v148 = vsel %vm132, 1, 0
    %v149 = vsel %vm133, 1, 0
    %v150 = vsel %vm134, 1, 0
    %v151 = vsel %vm135, 1, 0
    %v152 = vsel %vm136, 1, 0
    %v153 = vsel %vm137, 1, 0
    %v154 = vsel %vm138, 1, 0
    %v155 = vsel %vm139, 1, 0
    %v156 = vsel %vm140, 1, 0
    %v157 = vsel %vm141, 1, 0
    %v158 = vsel %vm142, 1, 0
    %v159 = vcvt.s32.f32 %v143
    %v160 = vcvt.s32.f32 %v144
    %v161 = vcvt.s32.f32 %v145
    %v162 = vcvt.s32.f32 %v146
    %v163 = vcvt.s32.f32 %v147
    %v164 = vcvt.s32.f32 %v148
    %v165 = vcvt.s32.f32 %v149
    %v166 = vcvt.s32.f32 %v150
    %v167 = vcvt.s32.f32 %v151
    %v168 = vcvt.s32.f32 %v152
    %v169 = vcvt.s32.f32 %v153
    %v170 = vcvt.s32.f32 %v154
    %v171 = vcvt.s32.f32 %v155
    %v172 = vcvt.s32.f32 %v156
    %v173 = vcvt.s32.f32 %v157
    %v174 = vcvt.s32.f32 %v158
    %v175 = vld [vmem:[#allocation2] sm:$0xff]
    %v176 = vld [vmem:[#allocation2 + $0x8] sm:$0xff]
    %v177 = vld [vmem:[#allocation2 + $0x10] sm:$0xff]
    %v178 = vld [vmem:[#allocation2 + $0x18] sm:$0xff]
    %v179 = vld [vmem:[#allocation2 + $0x20] sm:$0xff]
    %v180 = vld [vmem:[#allocation2 + $0x28] sm:$0xff]
    %v181 = vld [vmem:[#allocation2 + $0x30] sm:$0xff]
    %v182 = vld [vmem:[#allocation2 + $0x38] sm:$0xff]
    %v183 = vld [vmem:[#allocation2 + $0x40] sm:$0xff]
    %v184 = vld [vmem:[#allocation2 + $0x48] sm:$0xff]
    %v185 = vld [vmem:[#allocation2 + $0x50] sm:$0xff]
    %v186 = vld [vmem:[#allocation2 + $0x58] sm:$0xff]
    %v187 = vld [vmem:[#allocation2 + $0x60] sm:$0xff]
    %v188 = vld [vmem:[#allocation2 + $0x68] sm:$0xff]
    %v189 = vld [vmem:[#allocation2 + $0x70] sm:$0xff]
    %v190 = vld [vmem:[#allocation2 + $0x78] sm:$0xff]
    %v191 = vld [vmem:[#allocation5] sm:$0xff]
    %v192 = vld [vmem:[#allocation5 + $0x8] sm:$0xff]
    %v193 = vld [vmem:[#allocation5 + $0x10] sm:$0xff]
    %v194 = vld [vmem:[#allocation5 + $0x18] sm:$0xff]
    %v195 = vld [vmem:[#allocation5 + $0x20] sm:$0xff]
    %v196 = vld [vmem:[#allocation5 + $0x28] sm:$0xff]
    %v197 = vld [vmem:[#allocation5 + $0x30] sm:$0xff]
    %v198 = vld [vmem:[#allocation5 + $0x38] sm:$0xff]
    %v199 = vld [vmem:[#allocation5 + $0x40] sm:$0xff]
    %v200 = vld [vmem:[#allocation5 + $0x48] sm:$0xff]
    %v201 = vld [vmem:[#allocation5 + $0x50] sm:$0xff]
    %v202 = vld [vmem:[#allocation5 + $0x58] sm:$0xff]
    %v203 = vld [vmem:[#allocation5 + $0x60] sm:$0xff]
    %v204 = vld [vmem:[#allocation5 + $0x68] sm:$0xff]
    %v205 = vld [vmem:[#allocation5 + $0x70] sm:$0xff]
    %v206 = vld [vmem:[#allocation5 + $0x78] sm:$0xff]
    %207 = vmatprep.subr.mxu0 0.0
    %208 = vmatpush1.msra.mxu0 %v159
    %209 = vmatprep.subr.mxu0 0.0
    %210 = vmatpush1.msra.mxu0 %v160
    %211 = vmatprep.subr.mxu0 0.0
    %212 = vmatpush1.msra.mxu0 %v161
    %213 = vmatprep.subr.mxu0 0.0
    %214 = vmatpush1.msra.mxu0 %v162
    %215 = vmatprep.subr.mxu0 0.0
    %216 = vmatpush1.msra.mxu0 %v163
    %217 = vmatprep.subr.mxu0 0.0
    %218 = vmatpush1.msra.mxu0 %v164
    %219 = vmatprep.subr.mxu0 0.0
    %220 = vmatpush1.msra.mxu0 %v165
    %221 = vmatprep.subr.mxu0 0.0
    %222 = vmatpush1.msra.mxu0 %v166
    %223 = vmatprep.subr.mxu0 0.0
    %224 = vmatpush1.msra.mxu0 %v167
    %225 = vmatprep.subr.mxu0 0.0
    %226 = vmatpush1.msra.mxu0 %v168
    %227 = vmatprep.subr.mxu0 0.0
    %228 = vmatpush1.msra.mxu0 %v169
    %229 = vmatprep.subr.mxu0 0.0
    %230 = vmatpush1.msra.mxu0 %v170
    %231 = vmatprep.subr.mxu0 0.0
    %232 = vmatpush1.msra.mxu0 %v171
    %233 = vmatprep.subr.mxu0 0.0
    %234 = vmatpush1.msra.mxu0 %v172
    %235 = vmatprep.subr.mxu0 0.0
    %236 = vmatpush1.msra.mxu0 %v173
    %237 = vmatprep.subr.mxu0 0.0
    %238 = vmatpush1.msra.mxu0 %v174
    %239 = vmatprep.subr.mxu0 0.0
    %240 = vmatpush1.msra.mxu0 0.0
    %241 = vmatprep.subr.mxu0 0.0
    %242 = vmatpush1.msra.mxu0 0.0
    %243 = vmatprep.subr.mxu0 0.0
    %244 = vmatpush1.msra.mxu0 0.0
    %245 = vmatprep.subr.mxu0 0.0
    %246 = vmatpush1.msra.mxu0 0.0
    %247 = vmatprep.subr.mxu0 0.0
    %248 = vmatpush1.msra.mxu0 0.0
    %249 = vmatprep.subr.mxu0 0.0
    %250 = vmatpush1.msra.mxu0 0.0
    %251 = vmatprep.subr.mxu0 0.0
    %252 = vmatpush1.msra.mxu0 0.0
    %253 = vmatprep.subr.mxu0 0.0
    %254 = vmatpush1.msra.mxu0 0.0
    %255 = vmatprep.subr.mxu0 0.0
    %256 = vmatpush1.msra.mxu0 0.0
    %257 = vmatprep.subr.mxu0 0.0
    %258 = vmatpush1.msra.mxu0 0.0
    %259 = vmatprep.subr.mxu0 0.0
    %260 = vmatpush1.msra.mxu0 0.0
    %261 = vmatprep.subr.mxu0 0.0
    %262 = vmatpush1.msra.mxu0 0.0
    %263 = vmatprep.subr.mxu0 0.0
    %264 = vmatpush1.msra.mxu0 0.0
    %265 = vmatprep.subr.mxu0 0.0
    %266 = vmatpush1.msra.mxu0 0.0
    %267 = vmatprep.subr.mxu0 0.0
    %268 = vmatpush1.msra.mxu0 0.0
    %269 = vmatprep.subr.mxu0 0.0
    %270 = vmatpush1.msra.mxu0 0.0
    %271 = vmatprep.mubr.f32.mxu0 0.0
    %272 = vmatmul.mubr.f32.gmra.mrb[0].mxu0 %v191
    %v273 = vpop.f32.mrb[0].mxu0
    %v274 = vadd.f32 0.0, %v273
    %v275 = vpop.f32.mrb[0].mxu0
    %276 = vmatprep.mubr.f32.mxu0 0.0
    %277 = vmatmul.mubr.f32.gmra.mrb[0].mxu0 %v192
    %v278 = vpop.f32.mrb[0].mxu0
    %v279 = vadd.f32 0.0, %v278
    %v280 = vpop.f32.mrb[0].mxu0
    %281 = vmatprep.mubr.f32.mxu0 0.0
    %282 = vmatmul.mubr.f32.gmra.mrb[0].mxu0 %v193
    %v283 = vpop.f32.mrb[0].mxu0
    %v284 = vadd.f32 0.0, %v283
    %v285 = vpop.f32.mrb[0].mxu0
    %286 = vmatprep.mubr.f32.mxu0 0.0
    %287 = vmatmul.mubr.f32.gmra.mrb[0].mxu0 %v194
    %v288 = vpop.f32.mrb[0].mxu0
    %v289 = vadd.f32 0.0, %v288
    %v290 = vpop.f32.mrb[0].mxu0
    %291 = vmatprep.mubr.f32.mxu0 0.0
    %292 = vmatmul.mubr.f32.gmra.mrb[0].mxu0 %v195
    %v293 = vpop.f32.mrb[0].mxu0
    %v294 = vadd.f32 0.0, %v293
    %v295 = vpop.f32.mrb[0].mxu0
    %296 = vmatprep.mubr.f32.mxu0 0.0
    %297 = vmatmul.mubr.f32.gmra.mrb[0].mxu0 %v196
    %v298 = vpop.f32.mrb[0].mxu0
    %v299 = vadd.f32 0.0, %v298
    %v300 = vpop.f32.mrb[0].mxu0
    %301 = vmatprep.mubr.f32.mxu0 0.0
    %302 = vmatmul.mubr.f32.gmra.mrb[0].mxu0 %v197
    %v303 = vpop.f32.mrb[0].mxu0
    %v304 = vadd.f32 0.0, %v303
    %v305 = vpop.f32.mrb[0].mxu0
    %306 = vmatprep.mubr.f32.mxu0 0.0
    %307 = vmatmul.mubr.f32.gmra.mrb[0].mxu0 %v198
    %v308 = vpop.f32.mrb[0].mxu0
    %v309 = vadd.f32 0.0, %v308
    %v310 = vpop.f32.mrb[0].mxu0
    %311 = vmatprep.mubr.f32.mxu0 0.0
    %312 = vmatmul.mubr.f32.gmra.mrb[0].mxu0 %v199
    %v313 = vpop.f32.mrb[0].mxu0
    %v314 = vadd.f32 0.0, %v313
    %v315 = vpop.f32.mrb[0].mxu0
    %316 = vmatprep.mubr.f32.mxu0 0.0
    %317 = vmatmul.mubr.f32.gmra.mrb[0].mxu0 %v200
    %v318 = vpop.f32.mrb[0].mxu0
    %v319 = vadd.f32 0.0, %v318
    %v320 = vpop.f32.mrb[0].mxu0
    %321 = vmatprep.mubr.f32.mxu0 0.0
    %322 = vmatmul.mubr.f32.gmra.mrb[0].mxu0 %v201
    %v323 = vpop.f32.mrb[0].mxu0
    %v324 = vadd.f32 0.0, %v323
    %v325 = vpop.f32.mrb[0].mxu0
    %326 = vmatprep.mubr.f32.mxu0 0.0
    %327 = vmatmul.mubr.f32.gmra.mrb[0].mxu0 %v202
    %v328 = vpop.f32.mrb[0].mxu0
    %v329 = vadd.f32 0.0, %v328
    %v330 = vpop.f32.mrb[0].mxu0
    %331 = vmatprep.mubr.f32.mxu0 0.0
    %332 = vmatmul.mubr.f32.gmra.mrb[0].mxu0 %v203
    %v333 = vpop.f32.mrb[0].mxu0
    %v334 = vadd.f32 0.0, %v333
    %v335 = vpop.f32.mrb[0].mxu0
    %336 = vmatprep.mubr.f32.mxu0 0.0
    %337 = vmatmul.mubr.f32.gmra.mrb[0].mxu0 %v204
    %v338 = vpop.f32.mrb[0].mxu0
    %v339 = vadd.f32 0.0, %v338
    %v340 = vpop.f32.mrb[0].mxu0
    %341 = vmatprep.mubr.f32.mxu0 0.0
    %342 = vmatmul.mubr.f32.gmra.mrb[0].mxu0 %v205
    %v343 = vpop.f32.mrb[0].mxu0
    %v344 = vadd.f32 0.0, %v343
    %v345 = vpop.f32.mrb[0].mxu0
    %346 = vmatprep.mubr.f32.mxu0 0.0
    %347 = vmatmul.mubr.f32.gmra.mrb[0].mxu0 %v206
    %v348 = vpop.f32.mrb[0].mxu0
    %v349 = vadd.f32 0.0, %v348
    %v350 = vpop.f32.mrb[0].mxu0
    %351 = vdwg.mxu0
    %352 = vmatprep.subr.mxu0 0.0
    %353 = vmatpush1.msra.mxu0 %v106
    %354 = vmatprep.subr.mxu0 0.0
    %355 = vmatpush1.msra.mxu0 %v107
    %356 = vmatprep.subr.mxu0 0.0
    %357 = vmatpush1.msra.mxu0 %v108
    %358 = vmatprep.subr.mxu0 0.0
    %359 = vmatpush1.msra.mxu0 %v109
    %360 = vmatprep.subr.mxu0 0.0
    %361 = vmatpush1.msra.mxu0 %v110
    %362 = vmatprep.subr.mxu0 0.0
    %363 = vmatpush1.msra.mxu0 %v111
    %364 = vmatprep.subr.mxu0 0.0
    %365 = vmatpush1.msra.mxu0 %v112
    %366 = vmatprep.subr.mxu0 0.0
    %367 = vmatpush1.msra.mxu0 %v113
    %368 = vmatprep.subr.mxu0 0.0
    %369 = vmatpush1.msra.mxu0 %v114
    %370 = vmatprep.subr.mxu0 0.0
    %371 = vmatpush1.msra.mxu0 %v115
    %372 = vmatprep.subr.mxu0 0.0
    %373 = vmatpush1.msra.mxu0 %v116
    %374 = vmatprep.subr.mxu0 0.0
    %375 = vmatpush1.msra.mxu0 %v117
    %376 = vmatprep.subr.mxu0 0.0
    %377 = vmatpush1.msra.mxu0 %v118
    %378 = vmatprep.subr.mxu0 0.0
    %379 = vmatpush1.msra.mxu0 %v119
    %380 = vmatprep.subr.mxu0 0.0
    %381 = vmatpush1.msra.mxu0 %v120
    %382 = vmatprep.subr.mxu0 0.0
    %383 = vmatpush1.msra.mxu0 %v121
    %384 = vmatprep.subr.mxu0 0.0
    %385 = vmatpush1.msra.mxu0 0.0
    %386 = vmatprep.subr.mxu0 0.0
    %387 = vmatpush1.msra.mxu0 0.0
    %388 = vmatprep.subr.mxu0 0.0
    %389 = vmatpush1.msra.mxu0 0.0
    %390 = vmatprep.subr.mxu0 0.0
    %391 = vmatpush1.msra.mxu0 0.0
    %392 = vmatprep.subr.mxu0 0.0
    %393 = vmatpush1.msra.mxu0 0.0
    %394 = vmatprep.subr.mxu0 0.0
    %395 = vmatpush1.msra.mxu0 0.0
    %396 = vmatprep.subr.mxu0 0.0
    %397 = vmatpush1.msra.mxu0 0.0
    %398 = vmatprep.subr.mxu0 0.0
    %399 = vmatpush1.msra.mxu0 0.0
    %400 = vmatprep.subr.mxu0 0.0
    %401 = vmatpush1.msra.mxu0 0.0
    %402 = vmatprep.subr.mxu0 0.0
    %403 = vmatpush1.msra.mxu0 0.0
    %404 = vmatprep.subr.mxu0 0.0
    %405 = vmatpush1.msra.mxu0 0.0
    %406 = vmatprep.subr.mxu0 0.0
    %407 = vmatpush1.msra.mxu0 0.0
    %408 = vmatprep.subr.mxu0 0.0
    %409 = vmatpush1.msra.mxu0 0.0
    %410 = vmatprep.subr.mxu0 0.0
    %411 = vmatpush1.msra.mxu0 0.0
    %412 = vmatprep.subr.mxu0 0.0
    %413 = vmatpush1.msra.mxu0 0.0
    %414 = vmatprep.subr.mxu0 0.0
    %415 = vmatpush1.msra.mxu0 0.0
    %416 = vmatprep.mubr.f32.mxu0 0.0
    %417 = vmatmul.mubr.f32.gmra.mrb[0].mxu0 %v175
    %v418 = vpop.f32.mrb[0].mxu0
    %v419 = vadd.f32 %v274, %v418
    %v420 = vpop.f32.mrb[0].mxu0
    %421 = vmatprep.mubr.f32.mxu0 0.0
    %422 = vmatmul.mubr.f32.gmra.mrb[0].mxu0 %v176
    %v423 = vpop.f32.mrb[0].mxu0
    %v424 = vadd.f32 %v279, %v423
    %v425 = vpop.f32.mrb[0].mxu0
    %426 = vmatprep.mubr.f32.mxu0 0.0
    %427 = vmatmul.mubr.f32.gmra.mrb[0].mxu0 %v177
    %v428 = vpop.f32.mrb[0].mxu0
    %v429 = vadd.f32 %v284, %v428
    %v430 = vpop.f32.mrb[0].mxu0
    %431 = vmatprep.mubr.f32.mxu0 0.0
    %432 = vmatmul.mubr.f32.gmra.mrb[0].mxu0 %v178
    %v433 = vpop.f32.mrb[0].mxu0
    %v434 = vadd.f32 %v289, %v433
    %v435 = vpop.f32.mrb[0].mxu0
    %436 = vmatprep.mubr.f32.mxu0 0.0
    %437 = vmatmul.mubr.f32.gmra.mrb[0].mxu0 %v179
    %v438 = vpop.f32.mrb[0].mxu0
    %v439 = vadd.f32 %v294, %v438
    %v440 = vpop.f32.mrb[0].mxu0
    %441 = vmatprep.mubr.f32.mxu0 0.0
    %442 = vmatmul.mubr.f32.gmra.mrb[0].mxu0 %v180
    %v443 = vpop.f32.mrb[0].mxu0
    %v444 = vadd.f32 %v299, %v443
    %v445 = vpop.f32.mrb[0].mxu0
    %446 = vmatprep.mubr.f32.mxu0 0.0
    %447 = vmatmul.mubr.f32.gmra.mrb[0].mxu0 %v181
    %v448 = vpop.f32.mrb[0].mxu0
    %v449 = vadd.f32 %v304, %v448
    %v450 = vpop.f32.mrb[0].mxu0
    %451 = vmatprep.mubr.f32.mxu0 0.0
    %452 = vmatmul.mubr.f32.gmra.mrb[0].mxu0 %v182
    %v453 = vpop.f32.mrb[0].mxu0
    %v454 = vadd.f32 %v309, %v453
    %v455 = vpop.f32.mrb[0].mxu0
    %456 = vmatprep.mubr.f32.mxu0 0.0
    %457 = vmatmul.mubr.f32.gmra.mrb[0].mxu0 %v183
    %v458 = vpop.f32.mrb[0].mxu0
    %v459 = vadd.f32 %v314, %v458
    %v460 = vpop.f32.mrb[0].mxu0
    %461 = vmatprep.mubr.f32.mxu0 0.0
    %462 = vmatmul.mubr.f32.gmra.mrb[0].mxu0 %v184
    %v463 = vpop.f32.mrb[0].mxu0
    %v464 = vadd.f32 %v319, %v463
    %v465 = vpop.f32.mrb[0].mxu0
    %466 = vmatprep.mubr.f32.mxu0 0.0
    %467 = vmatmul.mubr.f32.gmra.mrb[0].mxu0 %v185
    %v468 = vpop.f32.mrb[0].mxu0
    %v469 = vadd.f32 %v324, %v468
    %v470 = vpop.f32.mrb[0].mxu0
    %471 = vmatprep.mubr.f32.mxu0 0.0
    %472 = vmatmul.mubr.f32.gmra.mrb[0].mxu0 %v186
    %v473 = vpop.f32.mrb[0].mxu0
    %v474 = vadd.f32 %v329, %v473
    %v475 = vpop.f32.mrb[0].mxu0
    %476 = vmatprep.mubr.f32.mxu0 0.0
    %477 = vmatmul.mubr.f32.gmra.mrb[0].mxu0 %v187
    %v478 = vpop.f32.mrb[0].mxu0
    %v479 = vadd.f32 %v334, %v478
    %v480 = vpop.f32.mrb[0].mxu0
    %481 = vmatprep.mubr.f32.mxu0 0.0
    %482 = vmatmul.mubr.f32.gmra.mrb[0].mxu0 %v188
    %v483 = vpop.f32.mrb[0].mxu0
    %v484 = vadd.f32 %v339, %v483
    %v485 = vpop.f32.mrb[0].mxu0
    %486 = vmatprep.mubr.f32.mxu0 0.0
    %487 = vmatmul.mubr.f32.gmra.mrb[0].mxu0 %v189
    %v488 = vpop.f32.mrb[0].mxu0
    %v489 = vadd.f32 %v344, %v488
    %v490 = vpop.f32.mrb[0].mxu0
    %491 = vmatprep.mubr.f32.mxu0 0.0
    %492 = vmatmul.mubr.f32.gmra.mrb[0].mxu0 %v190
    %v493 = vpop.f32.mrb[0].mxu0
    %v494 = vadd.f32 %v349, %v493
    %v495 = vpop.f32.mrb[0].mxu0
    %496 = vdwg.mxu0
    %v497 = vmax.f32 %v419, 0.0
    %v498 = vmax.f32 %v424, 0.0
    %v499 = vmax.f32 %v429, 0.0
    %v500 = vmax.f32 %v434, 0.0
    %v501 = vmax.f32 %v439, 0.0
    %v502 = vmax.f32 %v444, 0.0
    %v503 = vmax.f32 %v449, 0.0
    %v504 = vmax.f32 %v454, 0.0
    %v505 = vmax.f32 %v459, 0.0
    %v506 = vmax.f32 %v464, 0.0
    %v507 = vmax.f32 %v469, 0.0
    %v508 = vmax.f32 %v474, 0.0
    %v509 = vmax.f32 %v479, 0.0
    %v510 = vmax.f32 %v484, 0.0
    %v511 = vmax.f32 %v489, 0.0
    %v512 = vmax.f32 %v494, 0.0
    %v513 = vld [vmem:[%s4] sm:$0xff]
    %v514 = vld [vmem:[%s5] sm:$0xff]
    %516 = vset.pattern.permute.xlu0 0
    %517 = vperm.xlu0 %516, %v514
    %v518 = vpop.permute.xlu0 %517
    %520 = vmatprep.subr.mxu0 0.0
    %521 = vmatpush1.msra.mxu0 %v497
    %522 = vmatprep.subr.mxu0 0.0
    %523 = vmatpush1.msra.mxu0 %v498
    %524 = vmatprep.subr.mxu0 0.0
    %525 = vmatpush1.msra.mxu0 %v499
    %526 = vmatprep.subr.mxu0 0.0
    %527 = vmatpush1.msra.mxu0 %v500
    %528 = vmatprep.subr.mxu0 0.0
    %529 = vmatpush1.msra.mxu0 %v501
    %530 = vmatprep.subr.mxu0 0.0
    %531 = vmatpush1.msra.mxu0 %v502
    %532 = vmatprep.subr.mxu0 0.0
    %533 = vmatpush1.msra.mxu0 %v503
    %534 = vmatprep.subr.mxu0 0.0
    %535 = vmatpush1.msra.mxu0 %v504
    %536 = vmatprep.subr.mxu0 0.0
    %537 = vmatpush1.msra.mxu0 %v505
    %538 = vmatprep.subr.mxu0 0.0
    %539 = vmatpush1.msra.mxu0 %v506
    %540 = vmatprep.subr.mxu0 0.0
    %541 = vmatpush1.msra.mxu0 %v507
    %542 = vmatprep.subr.mxu0 0.0
    %543 = vmatpush1.msra.mxu0 %v508
    %544 = vmatprep.subr.mxu0 0.0
    %545 = vmatpush1.msra.mxu0 %v509
    %546 = vmatprep.subr.mxu0 0.0
    %547 = vmatpush1.msra.mxu0 %v510
    %548 = vmatprep.subr.mxu0 0.0
    %549 = vmatpush1.msra.mxu0 %v511
    %550 = vmatprep.subr.mxu0 0.0
    %551 = vmatpush1.msra.mxu0 %v512
    %552 = vmatprep.subr.mxu0 0.0
    %553 = vmatpush1.msra.mxu0 0.0
    %554 = vmatprep.subr.mxu0 0.0
    %555 = vmatpush1.msra.mxu0 0.0
    %556 = vmatprep.subr.mxu0 0.0
    %557 = vmatpush1.msra.mxu0 0.0
    %558 = vmatprep.subr.mxu0 0.0
    %559 = vmatpush1.msra.mxu0 0.0
    %560 = vmatprep.subr.mxu0 0.0
    %561 = vmatpush1.msra.mxu0 0.0
    %562 = vmatprep.subr.mxu0 0.0
    %563 = vmatpush1.msra.mxu0 0.0
    %564 = vmatprep.subr.mxu0 0.0
    %565 = vmatpush1.msra.mxu0 0.0
    %566 = vmatprep.subr.mxu0 0.0
    %567 = vmatpush1.msra.mxu0 0.0
    %568 = vmatprep.subr.mxu0 0.0
    %569 = vmatpush1.msra.mxu0 0.0
    %570 = vmatprep.subr.mxu0 0.0
    %571 = vmatpush1.msra.mxu0 0.0
    %572 = vmatprep.subr.mxu0 0.0
    %573 = vmatpush1.msra.mxu0 0.0
    %574 = vmatprep.subr.mxu0 0.0
    %575 = vmatpush1.msra.mxu0 0.0
    %576 = vmatprep.subr.mxu0 0.0
    %577 = vmatpush1.msra.mxu0 0.0
    %578 = vmatprep.subr.mxu0 0.0
    %579 = vmatpush1.msra.mxu0 0.0
    %580 = vmatprep.subr.mxu0 0.0
    %581 = vmatpush1.msra.mxu0 0.0
    %582 = vmatprep.subr.mxu0 0.0
    %583 = vmatpush1.msra.mxu0 0.0
    %584 = vmatprep.mubr.f32.mxu0 0.0
    %585 = vmatmul.mubr.f32.gmra.mrb[0].mxu0 %v513
    %v586 = vpop.f32.mrb[0].mxu0
    %v587 = vadd.f32 %v518, %v586
    %v588 = vpop.f32.mrb[0].mxu0
    %589 = vdwg.mxu0
    %590 = vst [vmem:[#allocation7] sm:$0xff] %v587
    // Predicated region
    $region34: #{tpu_custom_call.1} parent=1 // pred_check
      _
    $region35: #{tpu_custom_call.1} parent=1 // pred_check_branch
      %592 = sbr.rel (0) target = $region37
    $region36: #{tpu_custom_call.1} parent=1 // pred_region
      %s594 = ssub.s32 128, 128
      %595 = vsyncadd [#allocation4], %s594
      %s597 = sshll.u32 [#allocation7], 4
      %s598 = int_to_ptr.vmem [resolvable:$true] %s597
      %600 = dma.vmem_to_hbm [thread:$0]  %s598, 128, %s6, [#allocation4]
    $region37: #{tpu_custom_call.1} parent=1 // pred_fallthru
      _
    // Predicated region
    $region38: #{tpu_custom_call.1} parent=1 // pred_check
      _
    $region39: #{tpu_custom_call.1} parent=1 // pred_check_branch
      %602 = sbr.rel (0) target = $region41
    $region40: #{tpu_custom_call.1} parent=1 // pred_region
      %603 = dma.done [#allocation4], 128
    $region41: #{tpu_custom_call.1} parent=1 // pred_fallthru
      _
    %604 = vsyncpa [#allocation3], 1
    %605 = vsyncpa [#allocation6], 1
    %606 = vsyncpa [#allocation4], 1

</llo_original>
